<compile_context>
chip_gen: v7x
topology: tpu7x:2x2x1
jax: 0.10.0
libtpu: 0.0.40
codegen_flags: <defaults>
</compile_context>

<pallas_src>
import functools
import math

import jax
import jax.numpy as jnp
from jax.experimental import pallas as pl
from jax.experimental.pallas import tpu as pltpu


def build_pe_table(d_model: int, seq_len: int = 25) -> jnp.ndarray:
    """Exactly reproduces the PyTorch __init__ double loop.

    Note the intentional quirk of the reference: the odd-index exponent uses
    the raw index (i + 1), not (i + 1) // 2.  d_model must be even — the
    PyTorch code itself indexes pe[pos, i + 1] and would fail otherwise.
    """
    assert d_model % 2 == 0, "PositionalEncoder requires an even d_model"
    pos = jnp.arange(seq_len, dtype=jnp.float32)[:, None]            # (S, 1)
    i_even = jnp.arange(0, d_model, 2, dtype=jnp.float32)[None, :]   # (1, D/2)
    i_odd = i_even + 1.0
    pe_even = jnp.sin(pos / (10000.0 ** (2.0 * i_even / d_model)))   # (S, D/2)
    pe_odd = jnp.cos(pos / (10000.0 ** (2.0 * i_odd / d_model)))     # (S, D/2)
    pe = jnp.zeros((seq_len, d_model), dtype=jnp.float32)
    pe = pe.at[:, 0::2].set(pe_even)
    pe = pe.at[:, 1::2].set(pe_odd)
    return pe[None]                                                  # (1, S, D)


def _pe_add_kernel(x_ref, pe_ref, o_ref, *, scale):
    # Pure streaming broadcast-add: x (TB, TC) * scale + pe (1, TC).
    o_ref[...] = x_ref[...] * scale + pe_ref[...]


def _sublane_align(dtype) -> int:
    # Sub-32-bit dtypes pack along sublanes: 8 rows (f32), 16 (bf16), 32 (int8/fp8).
    return max(8, 32 // jnp.dtype(dtype).itemsize)


def _round_up(n: int, m: int) -> int:
    return ((n + m - 1) // m) * m


def _pick_tile(n: int, align: int, cap: int) -> int:
    """Largest multiple of `align` that divides `n` and is <= cap.

    Precondition (guaranteed by wrapper-side padding): n % align == 0, so this
    never falls back to a whole-dimension block or a misaligned tile.
    """
    assert n > 0 and n % align == 0
    cap = max(align, (cap // align) * align)
    if n <= cap:
        return n
    best = align
    d = align
    while d <= cap:
        if n % d == 0:
            best = d
        d += align
    return best


def positional_encoder(
    x: jnp.ndarray,
    pe: jnp.ndarray,
    d_model: int,
    *,
    force_pallas: bool = False,
    donate_x: bool = False,
    min_pallas_bytes: int = 512 * 1024,
) -> jnp.ndarray:
    """x: (B, S, D); pe: (1, S_max, D) with S <= S_max. Returns x*sqrt(d)+pe[:, :S]."""
    B, S, D = x.shape
    scale = math.sqrt(d_model)
    itemsize = jnp.dtype(x.dtype).itemsize

    # Glue in plain JAX: slice the table, match x's dtype.
    pe_sliced = pe[:, :S, :].astype(x.dtype)          # (1, S, D)

    # Small-input fast path: a (1,1)-ish grid custom call is pure launch/DMA
    # setup overhead; XLA fuses the elementwise op at least as well.
    if not force_pallas and B * S * D * itemsize < min_pallas_bytes:
        return x * scale + pe_sliced

    # Flatten lane-dense and pad to alignment so all tiles are dense/unmasked.
    N = S * D
    x2 = x.reshape(B, N)                              # (B, S*D)
    pe2 = pe_sliced.reshape(1, N)                     # (1, S*D)

    align = _sublane_align(x.dtype)
    B_pad = _round_up(B, align)
    N_pad = _round_up(N, 128)
    padded = (B_pad != B) or (N_pad != N)
    if padded:
        x2 = jnp.pad(x2, ((0, B_pad - B), (0, N_pad - N)))
        pe2 = jnp.pad(pe2, ((0, 0), (0, N_pad - N)))

    # Generation-aware VMEM budget: 2x double-buffered x + 2x double-buffered
    # out are the big buffers; cap each block at vmem_capacity / 8 bytes
    # (8 MiB blocks on v7x, 16 MiB on v5e/v6e) => live VMEM ~ vmem_capacity/2.
    try:
        vmem_cap = int(pltpu.get_tpu_info().vmem_capacity_bytes)
    except Exception:
        vmem_cap = 64 * 1024 * 1024   # conservative fallback (v7x per-core)
    block_elems_cap = max(vmem_cap // 8, 1 << 20) // itemsize

    row_cap = max(align, block_elems_cap // N_pad)
    TB = _pick_tile(B_pad, align, row_cap)
    col_cap = max(128, block_elems_cap // TB)
    TC = _pick_tile(N_pad, 128, col_cap)

    # v7x has 2 TensorCores sharing HBM: guarantee >= 2 steps along a
    # "parallel" grid axis so both cores are fed. Harmless on v5e/v6e.
    if (B_pad // TB) * (N_pad // TC) < 2:
        if B_pad >= 2 * align:
            TB = _pick_tile(B_pad, align, B_pad // 2)
        elif N_pad >= 2 * 128:
            TC = _pick_tile(N_pad, 128, N_pad // 2)

    n_row_tiles = B_pad // TB
    n_col_tiles = N_pad // TC

    # Explicit VMEM limit derived from the real live footprint, with headroom.
    live_bytes = 2 * (2 * TB * TC * itemsize) + 2 * (TC * itemsize)
    vmem_limit = int(min(vmem_cap * 7 // 8, max(2 * live_bytes, 32 << 20)))

    # Column axis is the OUTER (slowest) grid axis: pe's block index depends
    # only on it, so pe is not re-fetched across the inner row-tile axis.
    grid = (n_col_tiles, n_row_tiles)

    out2 = pl.pallas_call(
        functools.partial(_pe_add_kernel, scale=scale),
        out_shape=jax.ShapeDtypeStruct((B_pad, N_pad), x.dtype),
        grid_spec=pltpu.PrefetchScalarGridSpec(
            num_scalar_prefetch=0,
            grid=grid,
            in_specs=[
                pl.BlockSpec((TB, TC), lambda c, b: (b, c)),   # x tile
                pl.BlockSpec((1, TC), lambda c, b: (0, c)),    # pe tile (resident across b)
            ],
            out_specs=pl.BlockSpec((TB, TC), lambda c, b: (b, c)),
        ),
        compiler_params=pltpu.CompilerParams(
            dimension_semantics=("parallel", "parallel"),
            vmem_limit_bytes=vmem_limit,
        ),
        input_output_aliases=({0: 0} if donate_x else {}),
    )(x2, pe2)

    if padded:
        out2 = out2[:B, :N]
    return out2.reshape(B, S, D)


def positional_encoder_ref(x, pe, d_model):
    return x * math.sqrt(d_model) + pe[:, : x.shape[1], :].astype(x.dtype)


if __name__ == "__main__":
    d_model = 32
    seq_len_max = 25

    pe = build_pe_table(d_model, seq_len_max)
    key = jax.random.PRNGKey(0)

    # Case 1: small module-consistent shape (batch=2, 8 joints, d_model=32).
    # force_pallas=True so the demo exercises the kernel (default path would
    # take the small-input JAX fast path).
    B, S = 2, 8
    x = jax.random.normal(key, (B, S, d_model), dtype=jnp.float32)
    out = jax.block_until_ready(positional_encoder(x, pe, d_model, force_pallas=True))
    ref = positional_encoder_ref(x, pe, d_model)
    assert out.shape == (B, S, d_model)
    assert jnp.allclose(out, ref, atol=1e-6, rtol=1e-6)

    # Case 2: full seq_len=25 (S*D=800 not a multiple of 128) exercises the
    # padding path and the >=2-grid-step split.
    B2, S2 = 16, 25
    x2 = jax.random.normal(jax.random.PRNGKey(0), (B2, S2, d_model), dtype=jnp.float32)
    out2 = jax.block_until_ready(positional_encoder(x2, pe, d_model, force_pallas=True))
    ref2 = positional_encoder_ref(x2, pe, d_model)
    assert out2.shape == (B2, S2, d_model)
    assert jnp.allclose(out2, ref2, atol=1e-6, rtol=1e-6)

    # Case 3: small-input fast path (no pallas_call) still matches.
    out3 = jax.block_until_ready(positional_encoder(x, pe, d_model))
    assert jnp.allclose(out3, ref, atol=1e-6, rtol=1e-6)

    print("KERNEL_OK")
</pallas_src>

<mosaic_0001>
module attributes {stable_mosaic.version = 11 : i64} {
  func.func @_pe_add_kernel(%arg0: i32, %arg1: i32, %arg2: memref<8x128xf32, #tpu.memory_space<vmem>>, %arg3: memref<1x128xf32, #tpu.memory_space<vmem>>, %arg4: memref<8x128xf32, #tpu.memory_space<vmem>>) attributes {dimension_semantics = [#tpu.dimension_semantics<parallel>, #tpu.dimension_semantics<parallel>], iteration_bounds = array<i64: 2, 1>, scalar_prefetch = 0 : i64, scratch_operands = 0 : i64, tpu.core_type = #tpu.core_type<tc>, window_params = [{transform_indices = @transform_0, window_bounds = array<i64: 8, 128>}, {transform_indices = @transform_1, window_bounds = array<i64: 1, 128>}, {transform_indices = @transform_2, window_bounds = array<i64: 8, 128>}]} {
    %c0 = arith.constant 0 : index
    %c0_0 = arith.constant 0 : index
    %0 = vector.load %arg2[%c0, %c0_0] : memref<8x128xf32, #tpu.memory_space<vmem>>, vector<8x128xf32>
    %cst = arith.constant 5.65685415 : f32
    %1 = vector.broadcast %cst : f32 to vector<8x128xf32>
    %2 = arith.mulf %0, %1 : vector<8x128xf32>
    %c0_1 = arith.constant 0 : index
    %c0_2 = arith.constant 0 : index
    %3 = vector.load %arg3[%c0_1, %c0_2] : memref<1x128xf32, #tpu.memory_space<vmem>>, vector<1x128xf32>
    %4 = vector.broadcast %3 : vector<1x128xf32> to vector<8x128xf32>
    %5 = arith.addf %2, %4 : vector<8x128xf32>
    %c0_3 = arith.constant 0 : index
    %c0_4 = arith.constant 0 : index
    %6 = vector.load %arg4[%c0_3, %c0_4] : memref<8x128xf32, #tpu.memory_space<vmem>>, vector<8x128xf32>
    tpu.vector_store %arg4[%c0_3, %c0_4], %5 {strides = array<i32>} : memref<8x128xf32, #tpu.memory_space<vmem>>, vector<8x128xf32>,
    return
  }
  func.func @transform_0(%arg0: i32, %arg1: i32) -> (i32, i32) {
    %c0_i32 = arith.constant 0 : i32
    return %arg1, %arg0 : i32, i32
  }
  func.func @transform_1(%arg0: i32, %arg1: i32) -> (i32, i32) {
    %c0_i32 = arith.constant 0 : i32
    %c0_i32_0 = arith.constant 0 : i32
    return %c0_i32, %arg0 : i32, i32
  }
  func.func @transform_2(%arg0: i32, %arg1: i32) -> (i32, i32) {
    %c0_i32 = arith.constant 0 : i32
    return %arg1, %arg0 : i32, i32
  }
}

</mosaic_0001>

<llo_original>
// kernel: tpu_custom_call.1
$region0: #{tpu_custom_call.1}
  #allocation0 [shape = 'u32[]', space=smem, size = 0x4, offset = 0x4, fixed_abs, tag = 'smem constant byte address 0x4 - core index']
  #allocation1 [shape = 'u32[144,128]{1,0:T(1,128)}', space=vmem, size = 0x12000, scoped, tag = 'internal scratch']
  %s0 = inlined_call_operand.hbm [shape: f32[8,256], index: 0, kind: input, shape index: {}]
  %s1 = inlined_call_operand.vmem [shape: f32[1,256], index: 1, kind: input, shape index: {}]
  %s2 = inlined_call_operand.hbm [shape: f32[8,256], index: 2, kind: output, shape index: {}]
  %s3 = sld [smem:[#allocation0]]
  $region45: #{tpu_custom_call.1} parent=0
    _
  %s5 = ssub.s32 1, %s3
  %s6 = scalar_select 0, %s5, %s3
  $region1: #{tpu_custom_call.1} parent=0
    #allocation2 [shape = 'u8[8192]{0}', space=vmem, size = 0x2000, scoped, tag = 'input window, operand 0']
    #allocation3 [shape = 's32[2]{0}', space=sflag, size = 0x8, scoped, tag = 'scoped memory for tpu_custom_call.1']
    #allocation4 [shape = 's32[2]{0}', space=sflag, size = 0x8, scoped, tag = 'scoped memory for tpu_custom_call.1']
    #allocation5 [shape = 'u8[8192]{0}', space=vmem, size = 0x2000, scoped, tag = 'output window, operand 0']
    %7 = vsyncpa [#allocation3], 0
    %s8 = scalar_lea.sflag [#allocation3], 1
    %9 = vsyncpa %s8, 0
    %10 = vsyncpa [#allocation4], 0
    %s11 = scalar_lea.sflag [#allocation4], 1
    %12 = vsyncpa %s11, 0
    loop: start=0, step=1, limit=4
    $region2: #{tpu_custom_call.1} parent=1 // loop_pre_header
      _
    $region3: #{tpu_custom_call.1} parent=1 // loop_header
      %s14 = sphi 0, %s18
      %p15 = scmp.ge.s32.totalorder %s14, 4
      %s21 = sphi 0, %s33
      %s22 = sphi 0, %s29
      %s23 = sphi 0, %s21
      %s24 = sphi 0, %s22
      %s25 = sphi 0, %s23
      %s26 = sphi 0, %s24
      %s38 = sphi 0, %s40
      %s41 = sphi 0, %s38
      %s42 = sphi 0, %s41
      %s58 = sphi 0, %s42
      %s64 = sphi 0, %s66
      %s67 = sphi 0, %s64
      %s68 = sphi 0, %s67
      %s84 = sphi 0, %s68
      %s92 = sphi 0, %s94
      %s95 = sphi 0, %s92
      %s96 = sphi 0, %s95
      %s112 = sphi 0, %s96
    $region4: #{tpu_custom_call.1} parent=1 // loop_header_branch
      %17 = sbr.rel (%p15) target = $region8
    $region5: #{tpu_custom_call.1} parent=1 // loop_body
      %s19 = ssub.s32 %s14, 1
      %s20 = ssub.s32 %s14, 2
      %s27 = sadd.s32 1, %s22
      %p28 = scmp.ge.s32.totalorder %s27, 1
      %s29 = scalar_select %p28, 0, %s27
      %s30 = sadd.s32 1, %s21
      %s31 = scalar_select %p28, %s30, %s21
      %p32 = scmp.ge.s32.totalorder %s31, 2
      %s33 = scalar_select %p32, 0, %s31
      %s34 = ssub.s32 %s22, %s29
      %s35 = ssub.s32 %s21, %s33
      %s36 = sor.u32 %s34, %s35
      %p37 = scmp.eq.s32.totalorder %s36, 0
      %s39 = sadd.s32 %s38, 1
      %s40 = scalar_select %p37, %s38, %s39
      %p43 = pneg %p37
      %p44 = scmp.eq.s32.totalorder %s14, 1
      %p45 = por %p43, %p44
      %p46 = scmp.ne.s32.totalorder %s38, %s41
      %p47 = scmp.eq.s32.totalorder %s14, 0
      %p48 = por %p46, %p47
      %p49 = scmp.ne.s32.totalorder %s38, %s41
      %p50 = scmp.eq.s32.totalorder %s19, 1
      %p51 = por %p49, %p50
      %p52 = scmp.ne.s32.totalorder %s41, %s42
      %p53 = scmp.eq.s32.totalorder %s19, 0
      %p54 = por %p52, %p53
      %p55 = scmp.ne.s32.totalorder %s41, %s42
      %p56 = scmp.eq.s32.totalorder %s20, 1
      %p57 = por %p55, %p56
      %p59 = scmp.ne.s32.totalorder %s42, %s58
      %p60 = scmp.eq.s32.totalorder %s20, 0
      %p61 = por %p59, %p60
      %s62 = ssub.s32 %s21, %s33
      %p63 = scmp.eq.s32.totalorder %s62, 0
      %s65 = sadd.s32 %s64, 1
      %s66 = scalar_select %p63, %s64, %s65
      %p69 = pneg %p63
      %p70 = scmp.eq.s32.totalorder %s14, 1
      %p71 = por %p69, %p70
      %p72 = scmp.ne.s32.totalorder %s64, %s67
      %p73 = scmp.eq.s32.totalorder %s14, 0
      %p74 = por %p72, %p73
      %p75 = scmp.ne.s32.totalorder %s64, %s67
      %p76 = scmp.eq.s32.totalorder %s19, 1
      %p77 = por %p75, %p76
      %p78 = scmp.ne.s32.totalorder %s67, %s68
      %p79 = scmp.eq.s32.totalorder %s19, 0
      %p80 = por %p78, %p79
      %p81 = scmp.ne.s32.totalorder %s67, %s68
      %p82 = scmp.eq.s32.totalorder %s20, 1
      %p83 = por %p81, %p82
      %p85 = scmp.ne.s32.totalorder %s68, %s84
      %p86 = scmp.eq.s32.totalorder %s20, 0
      %p87 = por %p85, %p86
      %s88 = ssub.s32 %s22, %s29
      %s89 = ssub.s32 %s21, %s33
      %s90 = sor.u32 %s88, %s89
      %p91 = scmp.eq.s32.totalorder %s90, 0
      %s93 = sadd.s32 %s92, 1
      %s94 = scalar_select %p91, %s92, %s93
      %p97 = pneg %p91
      %p98 = scmp.eq.s32.totalorder %s14, 1
      %p99 = por %p97, %p98
      %p100 = scmp.ne.s32.totalorder %s92, %s95
      %p101 = scmp.eq.s32.totalorder %s14, 0
      %p102 = por %p100, %p101
      %p103 = scmp.ne.s32.totalorder %s92, %s95
      %p104 = scmp.eq.s32.totalorder %s19, 1
      %p105 = por %p103, %p104
      %p106 = scmp.ne.s32.totalorder %s95, %s96
      %p107 = scmp.eq.s32.totalorder %s19, 0
      %p108 = por %p106, %p107
      %p109 = scmp.ne.s32.totalorder %s95, %s96
      %p110 = scmp.eq.s32.totalorder %s20, 1
      %p111 = por %p109, %p110
      %p113 = scmp.ne.s32.totalorder %s96, %s112
      %p114 = scmp.eq.s32.totalorder %s20, 0
      %p115 = por %p113, %p114
      %p116 = scmp.le.s32.totalorder 1, %s14
      %p117 = scmp.lt.s32.totalorder %s14, 3
      %p118 = pnand %p116, %p117
      %p119 = pneg %p118
      // Predicated region
      $region9: #{tpu_custom_call.1} parent=5 // pred_check
        _
      $region10: #{tpu_custom_call.1} parent=5 // pred_check_branch
        %121 = sbr.rel (%p118) target = $region12
      $region11: #{tpu_custom_call.1} parent=5 // pred_region
        %s122 = ssub.s32 %s14, 1
      $region12: #{tpu_custom_call.1} parent=5 // pred_fallthru
        _
      %p123 = scmp.lt.s32.totalorder %s14, 2
      // Predicated region
      $region13: #{tpu_custom_call.1} parent=5 // pred_check
        %p124 = pneg %p123
      $region14: #{tpu_custom_call.1} parent=5 // pred_check_branch
        %126 = sbr.rel (%p124) target = $region16
      $region15: #{tpu_custom_call.1} parent=5 // pred_region
        // Predicated region
        $region17: #{tpu_custom_call.1} parent=15 // pred_check
          %p127 = pneg %p48
        $region18: #{tpu_custom_call.1} parent=15 // pred_check_branch
          %129 = sbr.rel (%p127) target = $region20
        $region19: #{tpu_custom_call.1} parent=15 // pred_region
          %s130 = sand.u32 %s38, 1
          %s131 = scalar_lea.sflag [#allocation3], %s130
          %s132 = sand.u32 %s38, 1
          %s133 = smul.addr %s132, 8
          %s134 = scalar_lea.vmem [#allocation2], %s133
          %s136 = ssub.s32 128, 128
          %137 = vsyncadd %s131, %s136
          %s138 = smul.addr %s22, 2
          %s139 = sadd.s32 %s21, %s138
          %s140 = smul.addr %s139, 128
          %s141 = scalar_lea.hbm %s0, %s140
          %s143 = sshll.u32 %s134, 4
          %s144 = int_to_ptr.vmem [resolvable:$true] %s143
          %146 = dma.hbm_to_vmem [thread:$0]  %s141, 128, %s144, %s131
        $region20: #{tpu_custom_call.1} parent=15 // pred_fallthru
          _
        // Predicated region
        $region21: #{tpu_custom_call.1} parent=15 // pred_check
          %p147 = pneg %p74
        $region22: #{tpu_custom_call.1} parent=15 // pred_check_branch
          %149 = sbr.rel (%p147) target = $region24
        $region23: #{tpu_custom_call.1} parent=15 // pred_region
          %p150 = scmp.lt.s32.totalorder %s21, 1
          %s151 = scalar_select %p150, %s21, 1
          %s152 = scalar_lea.vmem %s1, %s151
        $region24: #{tpu_custom_call.1} parent=15 // pred_fallthru
          _
      $region16: #{tpu_custom_call.1} parent=5 // pred_fallthru
        _
      %p153 = scmp.le.s32.totalorder 1, %s14
      %p154 = scmp.lt.s32.totalorder %s14, 3
      %p155 = pnand %p153, %p154
      %p156 = pneg %p155
      // Predicated region
      $region25: #{tpu_custom_call.1} parent=5 // pred_check
        _
      $region26: #{tpu_custom_call.1} parent=5 // pred_check_branch
        %158 = sbr.rel (%p155) target = $region28
      $region27: #{tpu_custom_call.1} parent=5 // pred_region
        %s159 = ssub.s32 %s14, 1
        %s160 = sand.u32 %s41, 1
        %s161 = scalar_lea.sflag [#allocation3], %s160
        %s162 = sand.u32 %s41, 1
        %s163 = smul.addr %s162, 8
        %s164 = scalar_lea.vmem [#allocation2], %s163
        // Predicated region
        $region29: #{tpu_custom_call.1} parent=27 // pred_check
          %p165 = pneg %p54
        $region30: #{tpu_custom_call.1} parent=27 // pred_check_branch
          %167 = sbr.rel (%p165) target = $region32
        $region31: #{tpu_custom_call.1} parent=27 // pred_region
          %168 = dma.done %s161, 128
        $region32: #{tpu_custom_call.1} parent=27 // pred_fallthru
          _
        %s169 = sand.u32 %s41, 1
        %s170 = scalar_lea.sflag [#allocation3], %s169
        %s171 = sand.u32 %s41, 1
        %s172 = smul.addr %s171, 8
        %s173 = scalar_lea.vmem [#allocation2], %s172
        %p174 = pneg %p54
        %p175 = pneg %p51
        %p176 = scmp.lt.s32.totalorder %s23, 1
        %s177 = scalar_select %p176, %s23, 1
        %s178 = scalar_lea.vmem %s1, %s177
        %p179 = pneg %p80
        %p180 = pneg %p77
        %p181 = pneg %p108
        %p182 = pneg %p105
        %s183 = sand.u32 %s95, 1
        %s184 = scalar_lea.sflag [#allocation4], %s183
        %s185 = sand.u32 %s95, 1
        %s186 = smul.addr %s185, 8
        %s187 = scalar_lea.vmem [#allocation5], %s186
        %p188 = scmp.lt.s32.totalorder %s23, 1
        %s189 = scalar_select %p188, %s23, 1
        %s190 = scalar_lea.vmem %s1, %s189
        %v191 = vld [vmem:[%s164] sm:$0xff]
        %v192 = vmul.f32 %v191, 5.656854
        %v193 = vld [vmem:[%s190] sm:$0x1]
        %v195 = vlaneseq
        %v196 = vshrl.u32 %v195, 7
        %v197 = vsub.s32 0, %v196
        %v198 = vrot.slane %v193, %v197
        %v200 = vadd.f32 %v192, %v198
        %201 = vst [vmem:[%s187] sm:$0xff] %v200
        %s202 = sand.u32 %s95, 1
        %s203 = scalar_lea.sflag [#allocation4], %s202
        %s204 = sand.u32 %s95, 1
        %s205 = smul.addr %s204, 8
        %s206 = scalar_lea.vmem [#allocation5], %s205
        // Predicated region
        $region33: #{tpu_custom_call.1} parent=27 // pred_check
          %p207 = pneg %p105
        $region34: #{tpu_custom_call.1} parent=27 // pred_check_branch
          %209 = sbr.rel (%p207) target = $region36
        $region35: #{tpu_custom_call.1} parent=27 // pred_region
          %s211 = ssub.s32 128, 128
          %212 = vsyncadd %s203, %s211
          %s213 = smul.addr %s24, 2
          %s214 = sadd.s32 %s23, %s213
          %s215 = smul.addr %s214, 128
          %s216 = scalar_lea.hbm %s2, %s215
          %s218 = sshll.u32 %s206, 4
          %s219 = int_to_ptr.vmem [resolvable:$true] %s218
          %221 = dma.vmem_to_hbm [thread:$0]  %s219, 128, %s216, %s203
        $region36: #{tpu_custom_call.1} parent=27 // pred_fallthru
          _
      $region28: #{tpu_custom_call.1} parent=5 // pred_fallthru
        _
      %p222 = scmp.le.s32.totalorder 2, %s14
      // Predicated region
      $region37: #{tpu_custom_call.1} parent=5 // pred_check
        %p223 = pneg %p222
      $region38: #{tpu_custom_call.1} parent=5 // pred_check_branch
        %225 = sbr.rel (%p223) target = $region40
      $region39: #{tpu_custom_call.1} parent=5 // pred_region
        %s226 = ssub.s32 %s14, 2
        // Predicated region
        $region41: #{tpu_custom_call.1} parent=39 // pred_check
          %p227 = pneg %p111
        $region42: #{tpu_custom_call.1} parent=39 // pred_check_branch
          %229 = sbr.rel (%p227) target = $region44
        $region43: #{tpu_custom_call.1} parent=39 // pred_region
          %s230 = sand.u32 %s96, 1
          %s231 = scalar_lea.sflag [#allocation4], %s230
          %s232 = sand.u32 %s96, 1
          %s233 = smul.addr %s232, 8
          %s234 = scalar_lea.vmem [#allocation5], %s233
          %235 = dma.done %s231, 128
        $region44: #{tpu_custom_call.1} parent=39 // pred_fallthru
          _
      $region40: #{tpu_custom_call.1} parent=5 // pred_fallthru
        _
    $region6: #{tpu_custom_call.1} parent=1 // loop_footer
      %s18 = sadd.s32 1, %s14
    $region7: #{tpu_custom_call.1} parent=1 // loop_footer_branch
      %13 = sbr.rel target = $region3
    $region8: #{tpu_custom_call.1} parent=1 // loop_exit
      _
    %236 = vsyncpa [#allocation3], 1
    %s237 = scalar_lea.sflag [#allocation3], 1
    %238 = vsyncpa %s237, 1
    %239 = vsyncpa [#allocation4], 1
    %s240 = scalar_lea.sflag [#allocation4], 1
    %241 = vsyncpa %s240, 1

</llo_original>
